<compile_context>
chip_gen: v7x
topology: tpu7x:2x2x1
jax: 0.10.0
libtpu: 0.0.40
codegen_flags: <defaults>
</compile_context>

<pallas_src>
import functools

import jax
import jax.numpy as jnp
from jax.experimental import pallas as pl
from jax.experimental.pallas import tpu as pltpu


# ----------------------------- fused Pallas kernel --------------------------

def fused_stem_gap_head_kernel(
        x_ref,       # (Bt, Hpad, W+2, Cin)  padded NHWC images, bf16
        wc_ref,      # (9*Cin, Cstem)        flattened 3x3 conv weight, bf16
        bc_ref,      # (1, Cstem)            conv bias, f32
        weff_ref,    # (out_dim, Cstem)      fused (timm head o fc) weight, f32
        beff_ref,    # (1, out_dim)          fused bias, f32
        o_ref,       # (Bt, 1, out_dim)
        pooled_ref,  # VMEM scratch (Bt, Cstem): per-image GAP sum accumulator
        *, bt, th, height, width, cin, inv_hw):
    j = pl.program_id(1)                      # row-tile index (reduction axis)
    n_j = pl.num_programs(1)
    cstem = bc_ref.shape[-1]
    out_dim = beff_ref.shape[-1]
    rows = bt * th * width

    @pl.when(j == 0)
    def _init():
        pooled_ref[...] = jnp.zeros_like(pooled_ref)

    # ---- conv stem: 3x3 'same' conv as ONE (rows, 9*Cin) @ (9*Cin, Cstem) ----
    if bt == 1:
        xall = x_ref[0, pl.ds(j * th, th + 2), :, :]      # (th+2, W+2, Cin)
        cols = [xall[dh:dh + th, dw:dw + width, :]
                for dh in range(3) for dw in range(3)]
    else:
        xall = x_ref[:, pl.ds(j * th, th + 2), :, :]      # (Bt, th+2, W+2, Cin)
        cols = [xall[:, dh:dh + th, dw:dw + width, :]
                for dh in range(3) for dw in range(3)]
    lhs = jnp.concatenate(cols, axis=-1).reshape(rows, 9 * cin)   # bf16
    conv = jnp.dot(lhs, wc_ref[...], preferred_element_type=jnp.float32)
    conv = jnp.maximum(conv + bc_ref[...], 0.0)           # bias + ReLU, f32

    # Mask rows past H out of the GAP sum (only traced when H % th != 0).
    if height % th:
        ridx = jax.lax.broadcasted_iota(jnp.int32, (rows, 1), 0)
        local_h = (ridx // width) % th
        conv = jnp.where(j * th + local_h < height, conv, 0.0)

    # ---- accumulate the global-average-pool sum for this batch tile ----
    if bt == 1:
        pooled_ref[...] += jnp.sum(conv, axis=0, keepdims=True)
    else:
        pooled_ref[...] += jnp.sum(conv.reshape(bt, th * width, cstem), axis=1)

    # ---- fused classifier head on the last row tile ----
    @pl.when(j == n_j - 1)
    def _head():
        pooled = pooled_ref[...] * inv_hw                 # GAP mean, (Bt, Cstem)
        if out_dim == 1:
            # out_dim == 1: VPU multiply + lane reduce (no 1-wide MXU matmul)
            out = jnp.sum(pooled * weff_ref[...], axis=-1, keepdims=True)
        else:
            out = jax.lax.dot_general(
                pooled, weff_ref[...], (((1,), (1,)), ((), ())),
                preferred_element_type=jnp.float32)
        out = out + beff_ref[...]                         # (Bt, out_dim)
        if bt == 1:
            o_ref[0] = out
        else:
            o_ref[...] = out.reshape(bt, 1, out_dim)


# ------------------------------ wrapper --------------------------------------

def _row_tile(h, w, target_rows=512):
    """Output rows per grid step so each conv matmul sees ~target_rows rows."""
    return max(1, min(h, target_rows // max(w, 1)))


def _batch_tile(b, max_bt=8):
    """Images per grid step; keep >= 2 parallel batch steps when B >= 2 so
    both v7x TensorCores get work."""
    bt = min(b, max_bt)
    while bt > 1 and (b % bt != 0 or b // bt < 2):
        bt -= 1
    return bt


@jax.jit
def timm_model_forward(x_nchw, params):
    # NCHW (PyTorch) -> NHWC
    x = jnp.transpose(x_nchw, (0, 2, 3, 1)).astype(jnp.float32)
    B, H, W, Cin = x.shape

    wc, bc = params["w_conv3"], params["b_conv"]      # (9,Cin,Cstem), (1,Cstem)
    w1, b1 = params["w1"], params["b1"]               # (Cstem,fc),    (1,fc)
    w2t, b2 = params["w2t"], params["b2"]             # (out,fc),      (1,out)
    cstem = wc.shape[-1]
    out_dim = w2t.shape[0]

    # Algebraic fusion of the two linear layers (exact: drop_rate=0.0 and no
    # nonlinearity between the timm classifier head and self.fc).
    w_eff_t = (w2t @ w1.T).astype(jnp.float32)        # (out_dim, Cstem)
    b_eff = (b1 @ w2t.T + b2).astype(jnp.float32)     # (1, out_dim)

    th = _row_tile(H, W)
    n_j = pl.cdiv(H, th)
    bt = _batch_tile(B)
    n_b = B // bt

    # 'same'-conv halo padding; extra zero rows at the bottom let the last row
    # tile read a full (th+2) window (their conv outputs are masked from GAP).
    Hpad = n_j * th + 2
    Wp = W + 2
    x_pad = jnp.pad(x, ((0, 0), (1, Hpad - H - 1), (1, 1), (0, 0)))
    x_pad = x_pad.astype(jnp.bfloat16)                      # bf16 MXU inputs
    wc_flat = wc.reshape(9 * Cin, cstem).astype(jnp.bfloat16)
    bc = bc.astype(jnp.float32)

    kernel = functools.partial(
        fused_stem_gap_head_kernel,
        bt=bt, th=th, height=H, width=W, cin=Cin, inv_hw=1.0 / float(H * W))

    flops = 2 * B * H * W * 9 * Cin * cstem + 2 * B * cstem * out_dim
    bytes_accessed = (2 * (B * Hpad * Wp * Cin + wc_flat.size)
                      + 4 * (bc.size + w_eff_t.size + b_eff.size + B * out_dim))

    out3 = pl.pallas_call(
        kernel,
        out_shape=jax.ShapeDtypeStruct((B, 1, out_dim), jnp.float32),
        grid=(n_b, n_j),
        in_specs=[
            # per-batch-tile padded images, resident across the row-tile axis
            pl.BlockSpec((bt, Hpad, Wp, Cin), lambda b, j: (b, 0, 0, 0)),
            # weights/biases: constant index_map -> fetched once, stay resident
            pl.BlockSpec((9 * Cin, cstem), lambda b, j: (0, 0)),
            pl.BlockSpec((1, cstem), lambda b, j: (0, 0)),
            pl.BlockSpec((out_dim, cstem), lambda b, j: (0, 0)),
            pl.BlockSpec((1, out_dim), lambda b, j: (0, 0)),
        ],
        out_specs=pl.BlockSpec((bt, 1, out_dim), lambda b, j: (b, 0, 0)),
        scratch_shapes=[pltpu.VMEM((bt, cstem), jnp.float32)],
        compiler_params=pltpu.CompilerParams(
            dimension_semantics=("parallel", "arbitrary"),
            vmem_limit_bytes=32 * 1024 * 1024),
        cost_estimate=pl.CostEstimate(flops=flops, transcendentals=0,
                                      bytes_accessed=bytes_accessed),
    )(x_pad, wc_flat, bc, w_eff_t, b_eff)

    return out3.reshape(B, out_dim)


# ------------------------------ params / reference ---------------------------

def init_params(key, cin=3, cstem=32, fc_num=1024, out_dim=1):
    k1, k2, k3, k4 = jax.random.split(key, 4)
    w_conv3 = jax.random.normal(k1, (9, cin, cstem), jnp.float32) / jnp.sqrt(9.0 * cin)
    b_conv = jnp.zeros((1, cstem), jnp.float32)
    w1 = jax.random.normal(k2, (cstem, fc_num), jnp.float32) / jnp.sqrt(float(cstem))
    b1 = jax.random.normal(k3, (1, fc_num), jnp.float32) * 0.01
    w2t = jax.random.normal(k4, (out_dim, fc_num), jnp.float32) / jnp.sqrt(float(fc_num))
    b2 = jnp.zeros((1, out_dim), jnp.float32)
    return dict(w_conv3=w_conv3, b_conv=b_conv, w1=w1, b1=b1, w2t=w2t, b2=b2)


def reference_forward(x_nchw, params):
    x = jnp.transpose(x_nchw, (0, 2, 3, 1)).astype(jnp.float32)
    B, H, W, Cin = x.shape
    xp = jnp.pad(x, ((0, 0), (1, 1), (1, 1), (0, 0)))
    cols = []
    for dh in range(3):
        for dw in range(3):
            cols.append(xp[:, dh:dh + H, dw:dw + W, :])
    patches = jnp.concatenate(cols, axis=-1).reshape(B * H * W, 9 * Cin)
    w_flat = params["w_conv3"].reshape(9 * Cin, -1)
    conv = jnp.maximum(patches @ w_flat + params["b_conv"], 0.0)
    pooled = conv.reshape(B, H * W, -1).mean(axis=1)
    feats = pooled @ params["w1"] + params["b1"]
    return feats @ params["w2t"].T + params["b2"]


if __name__ == "__main__":
    key = jax.random.PRNGKey(0)
    k_x, k_p = jax.random.split(key)

    B, Cin, H, W = 2, 3, 16, 16
    x = jax.random.normal(k_x, (B, Cin, H, W), jnp.float32)   # NCHW input
    params = init_params(k_p, cin=Cin, cstem=32, fc_num=1024, out_dim=1)

    out = timm_model_forward(x, params)
    out = jax.block_until_ready(out)

    ref = reference_forward(x, params)
    assert out.shape == ref.shape, (out.shape, ref.shape)
    # bf16 conv-stem inputs -> allow a few 1e-3 of absolute error on O(1) outputs
    assert jnp.allclose(out, ref, atol=2e-2, rtol=2e-2), \
        float(jnp.max(jnp.abs(out - ref)))

    print("KERNEL_OK")
</pallas_src>

<mosaic_0001>
module attributes {stable_mosaic.version = 11 : i64} {
  func.func @fused_stem_gap_head_kernel(%arg0: i32, %arg1: i32, %arg2: memref<1x18x18x3xbf16, #tpu.memory_space<vmem>>, %arg3: memref<27x32xbf16, #tpu.memory_space<vmem>>, %arg4: memref<1x32xf32, #tpu.memory_space<vmem>>, %arg5: memref<1x32xf32, #tpu.memory_space<vmem>>, %arg6: memref<1x1xf32, #tpu.memory_space<vmem>>, %arg7: memref<1x1x1xf32, #tpu.memory_space<vmem>>, %arg8: memref<1x32xf32, #tpu.memory_space<vmem>>) attributes {dimension_semantics = [#tpu.dimension_semantics<parallel>, #tpu.dimension_semantics<arbitrary>], iteration_bounds = array<i64: 2, 1>, scalar_prefetch = 0 : i64, scratch_operands = 1 : i64, tpu.core_type = #tpu.core_type<tc>, window_params = [{transform_indices = @transform_0, window_bounds = array<i64: 1, 18, 18, 3>}, {pipeline_mode = #tpu.pipeline_mode<synchronous>, transform_indices = @transform_1, window_bounds = array<i64: 27, 32>}, {pipeline_mode = #tpu.pipeline_mode<synchronous>, transform_indices = @transform_2, window_bounds = array<i64: 1, 32>}, {pipeline_mode = #tpu.pipeline_mode<synchronous>, transform_indices = @transform_3, window_bounds = array<i64: 1, 32>}, {pipeline_mode = #tpu.pipeline_mode<synchronous>, transform_indices = @transform_4, window_bounds = array<i64: 1, 1>}, {transform_indices = @transform_5, window_bounds = array<i64: 1, 1, 1>}]} {
    %c0_i32 = arith.constant 0 : i32
    %0 = arith.cmpi eq, %arg1, %c0_i32 : i32
    %1 = arith.extui %0 : i1 to i32
    %c0_i32_0 = arith.constant 0 : i32
    %2 = arith.cmpi ne, %1, %c0_i32_0 : i32
    scf.if %2 {
      %cst_15 = arith.constant 0.000000e+00 : f32
      %33 = vector.broadcast %cst_15 : f32 to vector<1x32xf32>
      %c0_16 = arith.constant 0 : index
      %c0_17 = arith.constant 0 : index
      %34 = vector.load %arg8[%c0_16, %c0_17] : memref<1x32xf32, #tpu.memory_space<vmem>>, vector<1x32xf32>
      tpu.vector_store %arg8[%c0_16, %c0_17], %33 {strides = array<i32>} : memref<1x32xf32, #tpu.memory_space<vmem>>, vector<1x32xf32>,
    } else {
    }
    %c16_i32 = arith.constant 16 : i32
    %3 = arith.muli %arg1, %c16_i32 : i32
    %c0 = arith.constant 0 : index
    %4 = arith.index_cast %3 : i32 to index
    %c0_1 = arith.constant 0 : index
    %c0_2 = arith.constant 0 : index
    %5 = vector.load %arg2[%c0, %4, %c0_1, %c0_2] : memref<1x18x18x3xbf16, #tpu.memory_space<vmem>>, vector<1x18x18x3xbf16>
    %6 = vector.shape_cast %5 : vector<1x18x18x3xbf16> to vector<18x18x3xbf16>
    %7 = vector.extract_strided_slice %6 {offsets = [0, 0, 0], sizes = [16, 16, 3], strides = [1, 1, 1]} : vector<18x18x3xbf16> to vector<16x16x3xbf16>
    %8 = vector.extract_strided_slice %6 {offsets = [0, 1, 0], sizes = [16, 16, 3], strides = [1, 1, 1]} : vector<18x18x3xbf16> to vector<16x16x3xbf16>
    %9 = vector.extract_strided_slice %6 {offsets = [0, 2, 0], sizes = [16, 16, 3], strides = [1, 1, 1]} : vector<18x18x3xbf16> to vector<16x16x3xbf16>
    %10 = vector.extract_strided_slice %6 {offsets = [1, 0, 0], sizes = [16, 16, 3], strides = [1, 1, 1]} : vector<18x18x3xbf16> to vector<16x16x3xbf16>
    %11 = vector.extract_strided_slice %6 {offsets = [1, 1, 0], sizes = [16, 16, 3], strides = [1, 1, 1]} : vector<18x18x3xbf16> to vector<16x16x3xbf16>
    %12 = vector.extract_strided_slice %6 {offsets = [1, 2, 0], sizes = [16, 16, 3], strides = [1, 1, 1]} : vector<18x18x3xbf16> to vector<16x16x3xbf16>
    %13 = vector.extract_strided_slice %6 {offsets = [2, 0, 0], sizes = [16, 16, 3], strides = [1, 1, 1]} : vector<18x18x3xbf16> to vector<16x16x3xbf16>
    %14 = vector.extract_strided_slice %6 {offsets = [2, 1, 0], sizes = [16, 16, 3], strides = [1, 1, 1]} : vector<18x18x3xbf16> to vector<16x16x3xbf16>
    %15 = vector.extract_strided_slice %6 {offsets = [2, 2, 0], sizes = [16, 16, 3], strides = [1, 1, 1]} : vector<18x18x3xbf16> to vector<16x16x3xbf16>
    %16 = tpu.concatenate %7, %8, %9, %10, %11, %12, %13, %14, %15 in 2 : vector<16x16x3xbf16>, vector<16x16x3xbf16>, vector<16x16x3xbf16>, vector<16x16x3xbf16>, vector<16x16x3xbf16>, vector<16x16x3xbf16>, vector<16x16x3xbf16>, vector<16x16x3xbf16>, vector<16x16x3xbf16> -> vector<16x16x27xbf16>
    %17 = vector.shape_cast %16 : vector<16x16x27xbf16> to vector<256x27xbf16>
    %c0_3 = arith.constant 0 : index
    %c0_4 = arith.constant 0 : index
    %18 = vector.load %arg3[%c0_3, %c0_4] : memref<27x32xbf16, #tpu.memory_space<vmem>>, vector<27x32xbf16>
    %cst = arith.constant dense<0.000000e+00> : vector<256x32xf32>
    %19 = tpu.matmul %17, %18, %cst {dimension_numbers = #tpu.dot_dimension_numbers<[1], [0], [0], [1], [0, 0, 1, 1], [], []>} : vector<256x27xbf16>, vector<27x32xbf16>, vector<256x32xf32> -> vector<256x32xf32>
    %c0_5 = arith.constant 0 : index
    %c0_6 = arith.constant 0 : index
    %20 = vector.load %arg4[%c0_5, %c0_6] : memref<1x32xf32, #tpu.memory_space<vmem>>, vector<1x32xf32>
    %21 = vector.broadcast %20 : vector<1x32xf32> to vector<256x32xf32>
    %22 = arith.addf %19, %21 : vector<256x32xf32>
    %cst_7 = arith.constant 0.000000e+00 : f32
    %23 = vector.broadcast %cst_7 : f32 to vector<256x32xf32>
    %24 = arith.maximumf %22, %23 : vector<256x32xf32>
    %c0_8 = arith.constant 0 : index
    %c0_9 = arith.constant 0 : index
    %25 = vector.load %arg8[%c0_8, %c0_9] : memref<1x32xf32, #tpu.memory_space<vmem>>, vector<1x32xf32>
    %cst_10 = arith.constant dense<0.000000e+00> : vector<32xf32>
    %26 = vector.multi_reduction <add>, %24, %cst_10 [0] : vector<256x32xf32> to vector<32xf32>
    %27 = vector.shape_cast %26 : vector<32xf32> to vector<1x32xf32>
    %28 = arith.addf %25, %27 : vector<1x32xf32>
    %c0_11 = arith.constant 0 : index
    %c0_12 = arith.constant 0 : index
    %29 = vector.load %arg8[%c0_11, %c0_12] : memref<1x32xf32, #tpu.memory_space<vmem>>, vector<1x32xf32>
    tpu.vector_store %arg8[%c0_11, %c0_12], %28 {strides = array<i32>} : memref<1x32xf32, #tpu.memory_space<vmem>>, vector<1x32xf32>,
    %c0_i32_13 = arith.constant 0 : i32
    %30 = arith.cmpi eq, %arg1, %c0_i32_13 : i32
    %31 = arith.extui %30 : i1 to i32
    %c0_i32_14 = arith.constant 0 : i32
    %32 = arith.cmpi ne, %31, %c0_i32_14 : i32
    scf.if %32 {
      %c0_15 = arith.constant 0 : index
      %c0_16 = arith.constant 0 : index
      %33 = vector.load %arg8[%c0_15, %c0_16] : memref<1x32xf32, #tpu.memory_space<vmem>>, vector<1x32xf32>
      %cst_17 = arith.constant 3.906250e-03 : f32
      %34 = vector.broadcast %cst_17 : f32 to vector<1x32xf32>
      %35 = arith.mulf %33, %34 : vector<1x32xf32>
      %c0_18 = arith.constant 0 : index
      %c0_19 = arith.constant 0 : index
      %36 = vector.load %arg5[%c0_18, %c0_19] : memref<1x32xf32, #tpu.memory_space<vmem>>, vector<1x32xf32>
      %37 = arith.mulf %35, %36 : vector<1x32xf32>
      %cst_20 = arith.constant dense<0.000000e+00> : vector<1xf32>
      %38 = vector.multi_reduction <add>, %37, %cst_20 [1] : vector<1x32xf32> to vector<1xf32>
      %39 = vector.shape_cast %38 : vector<1xf32> to vector<1x1xf32>
      %c0_21 = arith.constant 0 : index
      %c0_22 = arith.constant 0 : index
      %40 = vector.load %arg6[%c0_21, %c0_22] : memref<1x1xf32, #tpu.memory_space<vmem>>, vector<1x1xf32>
      %41 = arith.addf %39, %40 : vector<1x1xf32>
      %c0_23 = arith.constant 0 : index
      %c0_24 = arith.constant 0 : index
      %c0_25 = arith.constant 0 : index
      %42 = vector.load %arg7[%c0_23, %c0_24, %c0_25] : memref<1x1x1xf32, #tpu.memory_space<vmem>>, vector<1x1x1xf32>
      %43 = vector.shape_cast %42 : vector<1x1x1xf32> to vector<1x1xf32>
      %44 = vector.shape_cast %41 : vector<1x1xf32> to vector<1x1x1xf32>
      tpu.vector_store %arg7[%c0_23, %c0_24, %c0_25], %44 {strides = array<i32>} : memref<1x1x1xf32, #tpu.memory_space<vmem>>, vector<1x1x1xf32>,
    } else {
    }
    return
  }
  func.func @transform_0(%arg0: i32, %arg1: i32) -> (i32, i32, i32, i32) {
    %c0_i32 = arith.constant 0 : i32
    %c0_i32_0 = arith.constant 0 : i32
    %c0_i32_1 = arith.constant 0 : i32
    %c0_i32_2 = arith.constant 0 : i32
    return %arg0, %c0_i32, %c0_i32_0, %c0_i32_1 : i32, i32, i32, i32
  }
  func.func @transform_1(%arg0: i32, %arg1: i32) -> (i32, i32) {
    %c0_i32 = arith.constant 0 : i32
    %c0_i32_0 = arith.constant 0 : i32
    %c0_i32_1 = arith.constant 0 : i32
    return %c0_i32, %c0_i32_0 : i32, i32
  }
  func.func @transform_2(%arg0: i32, %arg1: i32) -> (i32, i32) {
    %c0_i32 = arith.constant 0 : i32
    %c0_i32_0 = arith.constant 0 : i32
    %c0_i32_1 = arith.constant 0 : i32
    return %c0_i32, %c0_i32_0 : i32, i32
  }
  func.func @transform_3(%arg0: i32, %arg1: i32) -> (i32, i32) {
    %c0_i32 = arith.constant 0 : i32
    %c0_i32_0 = arith.constant 0 : i32
    %c0_i32_1 = arith.constant 0 : i32
    return %c0_i32, %c0_i32_0 : i32, i32
  }
  func.func @transform_4(%arg0: i32, %arg1: i32) -> (i32, i32) {
    %c0_i32 = arith.constant 0 : i32
    %c0_i32_0 = arith.constant 0 : i32
    %c0_i32_1 = arith.constant 0 : i32
    return %c0_i32, %c0_i32_0 : i32, i32
  }
  func.func @transform_5(%arg0: i32, %arg1: i32) -> (i32, i32, i32) {
    %c0_i32 = arith.constant 0 : i32
    %c0_i32_0 = arith.constant 0 : i32
    %c0_i32_1 = arith.constant 0 : i32
    return %arg0, %c0_i32, %c0_i32_0 : i32, i32, i32
  }
}

</mosaic_0001>

<llo_original>
// kernel: timm_model_forward.1
$region0: #{timm_model_forward.1}
  #allocation0 [shape = 'u32[]', space=smem, size = 0x4, offset = 0x4, fixed_abs, tag = 'smem constant byte address 0x4 - core index']
  #allocation1 [shape = 'u32[144,128]{1,0:T(1,128)}', space=vmem, size = 0x12000, scoped, tag = 'internal scratch']
  #allocation2 [shape = 'f32[1,32]{1,0:T(1,128)}', space=vmem, size = 0x200, scoped, tag = 'scratch operand']
  #allocation3 [shape = 'f32[1,1]{1,0:T(1,128)S(1)}', space=vmem, size = 0x200, scoped, tag = 'scoped memory for timm_model_forward.1']
  %s0 = inlined_call_operand.vmem [shape: bf16[2,18,18,3], index: 0, kind: input, shape index: {}]
  %s1 = inlined_call_operand.vmem [shape: bf16[27,32], index: 1, kind: input, shape index: {}]
  %s2 = inlined_call_operand.vmem [shape: f32[1,32], index: 2, kind: input, shape index: {}]
  %s3 = inlined_call_operand.vmem [shape: f32[1,32], index: 3, kind: input, shape index: {}]
  %s4 = inlined_call_operand.<no memory space> [shape: f32[1,1], index: 4, kind: input, shape index: {}]
  %s5 = inlined_call_operand.vmem [shape: f32[2,1,1], index: 5, kind: output, shape index: {}]
  %s6 = sld [smem:[#allocation0]]
  $region61: #{timm_model_forward.1} parent=0
    _
  %s8 = ssub.s32 1, %s6
  %s9 = scalar_select 0, %s8, %s6
  %v10 = vstv %s4
  %11 = vst [vmem:[#allocation3] sm:$0x1] %v10
  loop: start=0, step=1, limit=4
  $region2: #{timm_model_forward.1} parent=0 // loop_pre_header
    _
  $region3: #{timm_model_forward.1} parent=0 // loop_header
    %s13 = sphi 0, %s17
    %p14 = scmp.ge.s32.totalorder %s13, 4
    %s20 = sphi 0, %s32
    %s21 = sphi 0, %s28
    %s22 = sphi 0, %s20
    %s23 = sphi 0, %s21
    %s24 = sphi 0, %s22
    %s25 = sphi 0, %s23
    %s35 = sphi 0, %s37
    %s38 = sphi 0, %s35
    %s39 = sphi 0, %s38
    %s55 = sphi 0, %s39
    %s59 = sphi 0, %s59
    %s61 = sphi 0, %s59
    %s62 = sphi 0, %s61
    %s76 = sphi 0, %s62
    %s80 = sphi 0, %s80
    %s82 = sphi 0, %s80
    %s83 = sphi 0, %s82
    %s97 = sphi 0, %s83
    %s101 = sphi 0, %s101
    %s103 = sphi 0, %s101
    %s104 = sphi 0, %s103
    %s118 = sphi 0, %s104
    %s122 = sphi 0, %s122
    %s124 = sphi 0, %s122
    %s125 = sphi 0, %s124
    %s139 = sphi 0, %s125
    %s145 = sphi 0, %s147
    %s148 = sphi 0, %s145
    %s149 = sphi 0, %s148
    %s165 = sphi 0, %s149
  $region4: #{timm_model_forward.1} parent=0 // loop_header_branch
    %16 = sbr.rel (%p14) target = $region8
  $region5: #{timm_model_forward.1} parent=0 // loop_body
    %s18 = ssub.s32 %s13, 1
    %s19 = ssub.s32 %s13, 2
    %s26 = sadd.s32 1, %s21
    %p27 = scmp.ge.s32.totalorder %s26, 1
    %s28 = scalar_select %p27, 0, %s26
    %s29 = sadd.s32 1, %s20
    %s30 = scalar_select %p27, %s29, %s20
    %p31 = scmp.ge.s32.totalorder %s30, 2
    %s32 = scalar_select %p31, 0, %s30
    %s33 = ssub.s32 %s20, %s32
    %p34 = scmp.eq.s32.totalorder %s33, 0
    %s36 = sadd.s32 %s35, 1
    %s37 = scalar_select %p34, %s35, %s36
    %p40 = pneg %p34
    %p41 = scmp.eq.s32.totalorder %s13, 1
    %p42 = por %p40, %p41
    %p43 = scmp.ne.s32.totalorder %s35, %s38
    %p44 = scmp.eq.s32.totalorder %s13, 0
    %p45 = por %p43, %p44
    %p46 = scmp.ne.s32.totalorder %s35, %s38
    %p47 = scmp.eq.s32.totalorder %s18, 1
    %p48 = por %p46, %p47
    %p49 = scmp.ne.s32.totalorder %s38, %s39
    %p50 = scmp.eq.s32.totalorder %s18, 0
    %p51 = por %p49, %p50
    %p52 = scmp.ne.s32.totalorder %s38, %s39
    %p53 = scmp.eq.s32.totalorder %s19, 1
    %p54 = por %p52, %p53
    %p56 = scmp.ne.s32.totalorder %s39, %s55
    %p57 = scmp.eq.s32.totalorder %s19, 0
    %p58 = por %p56, %p57
    %s60 = sadd.s32 %s59, 1
    %p63 = scmp.eq.s32.totalorder %s13, 1
    %p64 = scmp.ne.s32.totalorder %s59, %s61
    %p65 = scmp.eq.s32.totalorder %s13, 0
    %p66 = por %p64, %p65
    %p67 = scmp.ne.s32.totalorder %s59, %s61
    %p68 = scmp.eq.s32.totalorder %s18, 1
    %p69 = por %p67, %p68
    %p70 = scmp.ne.s32.totalorder %s61, %s62
    %p71 = scmp.eq.s32.totalorder %s18, 0
    %p72 = por %p70, %p71
    %p73 = scmp.ne.s32.totalorder %s61, %s62
    %p74 = scmp.eq.s32.totalorder %s19, 1
    %p75 = por %p73, %p74
    %p77 = scmp.ne.s32.totalorder %s62, %s76
    %p78 = scmp.eq.s32.totalorder %s19, 0
    %p79 = por %p77, %p78
    %s81 = sadd.s32 %s80, 1
    %p84 = scmp.eq.s32.totalorder %s13, 1
    %p85 = scmp.ne.s32.totalorder %s80, %s82
    %p86 = scmp.eq.s32.totalorder %s13, 0
    %p87 = por %p85, %p86
    %p88 = scmp.ne.s32.totalorder %s80, %s82
    %p89 = scmp.eq.s32.totalorder %s18, 1
    %p90 = por %p88, %p89
    %p91 = scmp.ne.s32.totalorder %s82, %s83
    %p92 = scmp.eq.s32.totalorder %s18, 0
    %p93 = por %p91, %p92
    %p94 = scmp.ne.s32.totalorder %s82, %s83
    %p95 = scmp.eq.s32.totalorder %s19, 1
    %p96 = por %p94, %p95
    %p98 = scmp.ne.s32.totalorder %s83, %s97
    %p99 = scmp.eq.s32.totalorder %s19, 0
    %p100 = por %p98, %p99
    %s102 = sadd.s32 %s101, 1
    %p105 = scmp.eq.s32.totalorder %s13, 1
    %p106 = scmp.ne.s32.totalorder %s101, %s103
    %p107 = scmp.eq.s32.totalorder %s13, 0
    %p108 = por %p106, %p107
    %p109 = scmp.ne.s32.totalorder %s101, %s103
    %p110 = scmp.eq.s32.totalorder %s18, 1
    %p111 = por %p109, %p110
    %p112 = scmp.ne.s32.totalorder %s103, %s104
    %p113 = scmp.eq.s32.totalorder %s18, 0
    %p114 = por %p112, %p113
    %p115 = scmp.ne.s32.totalorder %s103, %s104
    %p116 = scmp.eq.s32.totalorder %s19, 1
    %p117 = por %p115, %p116
    %p119 = scmp.ne.s32.totalorder %s104, %s118
    %p120 = scmp.eq.s32.totalorder %s19, 0
    %p121 = por %p119, %p120
    %s123 = sadd.s32 %s122, 1
    %p126 = scmp.eq.s32.totalorder %s13, 1
    %p127 = scmp.ne.s32.totalorder %s122, %s124
    %p128 = scmp.eq.s32.totalorder %s13, 0
    %p129 = por %p127, %p128
    %p130 = scmp.ne.s32.totalorder %s122, %s124
    %p131 = scmp.eq.s32.totalorder %s18, 1
    %p132 = por %p130, %p131
    %p133 = scmp.ne.s32.totalorder %s124, %s125
    %p134 = scmp.eq.s32.totalorder %s18, 0
    %p135 = por %p133, %p134
    %p136 = scmp.ne.s32.totalorder %s124, %s125
    %p137 = scmp.eq.s32.totalorder %s19, 1
    %p138 = por %p136, %p137
    %p140 = scmp.ne.s32.totalorder %s125, %s139
    %p141 = scmp.eq.s32.totalorder %s19, 0
    %p142 = por %p140, %p141
    %s143 = ssub.s32 %s20, %s32
    %p144 = scmp.eq.s32.totalorder %s143, 0
    %s146 = sadd.s32 %s145, 1
    %s147 = scalar_select %p144, %s145, %s146
    %p150 = pneg %p144
    %p151 = scmp.eq.s32.totalorder %s13, 1
    %p152 = por %p150, %p151
    %p153 = scmp.ne.s32.totalorder %s145, %s148
    %p154 = scmp.eq.s32.totalorder %s13, 0
    %p155 = por %p153, %p154
    %p156 = scmp.ne.s32.totalorder %s145, %s148
    %p157 = scmp.eq.s32.totalorder %s18, 1
    %p158 = por %p156, %p157
    %p159 = scmp.ne.s32.totalorder %s148, %s149
    %p160 = scmp.eq.s32.totalorder %s18, 0
    %p161 = por %p159, %p160
    %p162 = scmp.ne.s32.totalorder %s148, %s149
    %p163 = scmp.eq.s32.totalorder %s19, 1
    %p164 = por %p162, %p163
    %p166 = scmp.ne.s32.totalorder %s149, %s165
    %p167 = scmp.eq.s32.totalorder %s19, 0
    %p168 = por %p166, %p167
    %p169 = scmp.le.s32.totalorder 1, %s13
    %p170 = scmp.lt.s32.totalorder %s13, 3
    %p171 = pnand %p169, %p170
    %p172 = pneg %p171
    // Predicated region
    $region9: #{timm_model_forward.1} parent=5 // pred_check
      _
    $region10: #{timm_model_forward.1} parent=5 // pred_check_branch
      %174 = sbr.rel (%p171) target = $region12
    $region11: #{timm_model_forward.1} parent=5 // pred_region
      %s175 = ssub.s32 %s13, 1
      // Predicated region
      $region13: #{timm_model_forward.1} parent=11 // pred_check
        %p176 = pneg %p72
      $region14: #{timm_model_forward.1} parent=11 // pred_check_branch
        %178 = sbr.rel (%p176) target = $region16
      $region15: #{timm_model_forward.1} parent=11 // pred_region
        _
      $region16: #{timm_model_forward.1} parent=11 // pred_fallthru
        _
      // Predicated region
      $region17: #{timm_model_forward.1} parent=11 // pred_check
        %p179 = pneg %p93
      $region18: #{timm_model_forward.1} parent=11 // pred_check_branch
        %181 = sbr.rel (%p179) target = $region20
      $region19: #{timm_model_forward.1} parent=11 // pred_region
        _
      $region20: #{timm_model_forward.1} parent=11 // pred_fallthru
        _
      // Predicated region
      $region21: #{timm_model_forward.1} parent=11 // pred_check
        %p182 = pneg %p114
      $region22: #{timm_model_forward.1} parent=11 // pred_check_branch
        %184 = sbr.rel (%p182) target = $region24
      $region23: #{timm_model_forward.1} parent=11 // pred_region
        _
      $region24: #{timm_model_forward.1} parent=11 // pred_fallthru
        _
      // Predicated region
      $region25: #{timm_model_forward.1} parent=11 // pred_check
        %p185 = pneg %p135
      $region26: #{timm_model_forward.1} parent=11 // pred_check_branch
        %187 = sbr.rel (%p185) target = $region28
      $region27: #{timm_model_forward.1} parent=11 // pred_region
        _
      $region28: #{timm_model_forward.1} parent=11 // pred_fallthru
        _
    $region12: #{timm_model_forward.1} parent=5 // pred_fallthru
      _
    %p188 = scmp.lt.s32.totalorder %s13, 2
    // Predicated region
    $region29: #{timm_model_forward.1} parent=5 // pred_check
      %p189 = pneg %p188
    $region30: #{timm_model_forward.1} parent=5 // pred_check_branch
      %191 = sbr.rel (%p189) target = $region32
    $region31: #{timm_model_forward.1} parent=5 // pred_region
      // Predicated region
      $region33: #{timm_model_forward.1} parent=31 // pred_check
        %p192 = pneg %p45
      $region34: #{timm_model_forward.1} parent=31 // pred_check_branch
        %194 = sbr.rel (%p192) target = $region36
      $region35: #{timm_model_forward.1} parent=31 // pred_region
        %p195 = scmp.lt.s32.totalorder %s20, 1
        %s196 = scalar_select %p195, %s20, 1
        %s197 = smul.addr %s196, 54
        %s198 = smul.addr %s197, 4
        %s199 = scalar_lea.vmem %s0, %s198
      $region36: #{timm_model_forward.1} parent=31 // pred_fallthru
        _
    $region32: #{timm_model_forward.1} parent=5 // pred_fallthru
      _
    %p200 = scmp.le.s32.totalorder 1, %s13
    %p201 = scmp.lt.s32.totalorder %s13, 3
    %p202 = pnand %p200, %p201
    %p203 = pneg %p202
    // Predicated region
    $region37: #{timm_model_forward.1} parent=5 // pred_check
      _
    $region38: #{timm_model_forward.1} parent=5 // pred_check_branch
      %205 = sbr.rel (%p202) target = $region40
    $region39: #{timm_model_forward.1} parent=5 // pred_region
      %s206 = ssub.s32 %s13, 1
      %p207 = scmp.lt.s32.totalorder %s22, 1
      %s208 = scalar_select %p207, %s22, 1
      %s209 = smul.addr %s208, 54
      %s210 = smul.addr %s209, 4
      %s211 = scalar_lea.vmem %s0, %s210
      %p212 = pneg %p51
      %p213 = pneg %p48
      %p214 = pneg %p72
      %p215 = pneg %p69
      %p216 = pneg %p93
      %p217 = pneg %p90
      %p218 = pneg %p114
      %p219 = pneg %p111
      %p220 = pneg %p135
      %p221 = pneg %p132
      %p222 = pneg %p161
      %p223 = pneg %p158
      %p224 = scmp.lt.s32.totalorder %s22, 1
      %s225 = scalar_select %p224, %s22, 1
      %s226 = scalar_lea.vmem %s5, %s225
      %p227 = scmp.lt.s32.totalorder %s22, 1
      %s228 = scalar_select %p227, %s22, 1
      %s229 = smul.addr %s228, 54
      %s230 = smul.addr %s229, 4
      %s231 = scalar_lea.vmem %s0, %s230
      %p232 = scmp.lt.s32.totalorder %s22, 1
      %s233 = scalar_select %p232, %s22, 1
      %s234 = scalar_lea.vmem %s5, %s233
      %p236 = scmp.eq.s32.totalorder %s23, 0
      // Predicated region
      $region41: #{timm_model_forward.1} parent=39 // pred_check
        %p237 = pneg %p236
      $region42: #{timm_model_forward.1} parent=39 // pred_check_branch
        %239 = sbr.rel (%p237) target = $region44
      $region43: #{timm_model_forward.1} parent=39 // pred_region
        %vm240 = vcmask 253952
        %241 = vst.msk [vmem:[#allocation2] sm:$0x1] %vm240, 0.0
      $region44: #{timm_model_forward.1} parent=39 // pred_fallthru
        _
      %s242 = smul.u32 %s23, 16
      %s243 = smul.u32 %s242, 3
      %s244 = smul.addr %s243, 4
      %s245 = scalar_lea.vmem %s231, %s244
      %v246 = vld [vmem:[%s245] sm:$0xf]
      %v247 = vld [vmem:[%s245 + $0x4] sm:$0xf]
      %v248 = vld [vmem:[%s245 + $0x8] sm:$0x1]
      %v249 = vld [vmem:[%s245 + $0xc] sm:$0xf]
      %v250 = vld [vmem:[%s245 + $0x10] sm:$0xf]
      %v251 = vld [vmem:[%s245 + $0x14] sm:$0x1]
      %v252 = vld [vmem:[%s245 + $0x18] sm:$0xf]
      %v253 = vld [vmem:[%s245 + $0x1c] sm:$0xf]
      %v254 = vld [vmem:[%s245 + $0x20] sm:$0x1]
      %v255 = vld [vmem:[%s245 + $0x24] sm:$0xf]
      %v256 = vld [vmem:[%s245 + $0x28] sm:$0xf]
      %v257 = vld [vmem:[%s245 + $0x2c] sm:$0x1]
      %v258 = vld [vmem:[%s245 + $0x30] sm:$0xf]
      %v259 = vld [vmem:[%s245 + $0x34] sm:$0xf]
      %v260 = vld [vmem:[%s245 + $0x38] sm:$0x1]
      %v261 = vld [vmem:[%s245 + $0x3c] sm:$0xf]
      %v262 = vld [vmem:[%s245 + $0x40] sm:$0xf]
      %v263 = vld [vmem:[%s245 + $0x44] sm:$0x1]
      %v264 = vld [vmem:[%s245 + $0x48] sm:$0xf]
      %v265 = vld [vmem:[%s245 + $0x4c] sm:$0xf]
      %v266 = vld [vmem:[%s245 + $0x50] sm:$0x1]
      %v267 = vld [vmem:[%s245 + $0x54] sm:$0xf]
      %v268 = vld [vmem:[%s245 + $0x58] sm:$0xf]
      %v269 = vld [vmem:[%s245 + $0x5c] sm:$0x1]
      %v270 = vld [vmem:[%s245 + $0x60] sm:$0xf]
      %v271 = vld [vmem:[%s245 + $0x64] sm:$0xf]
      %v272 = vld [vmem:[%s245 + $0x68] sm:$0x1]
      %v273 = vld [vmem:[%s245 + $0x6c] sm:$0xf]
      %v274 = vld [vmem:[%s245 + $0x70] sm:$0xf]
      %v275 = vld [vmem:[%s245 + $0x74] sm:$0x1]
      %v276 = vld [vmem:[%s245 + $0x78] sm:$0xf]
      %v277 = vld [vmem:[%s245 + $0x7c] sm:$0xf]
      %v278 = vld [vmem:[%s245 + $0x80] sm:$0x1]
      %v279 = vld [vmem:[%s245 + $0x84] sm:$0xf]
      %v280 = vld [vmem:[%s245 + $0x88] sm:$0xf]
      %v281 = vld [vmem:[%s245 + $0x8c] sm:$0x1]
      %v282 = vld [vmem:[%s245 + $0x90] sm:$0xf]
      %v283 = vld [vmem:[%s245 + $0x94] sm:$0xf]
      %v284 = vld [vmem:[%s245 + $0x98] sm:$0x1]
      %v285 = vld [vmem:[%s245 + $0x9c] sm:$0xf]
      %v286 = vld [vmem:[%s245 + $0xa0] sm:$0xf]
      %v287 = vld [vmem:[%s245 + $0xa4] sm:$0x1]
      %v288 = vld [vmem:[%s245 + $0xa8] sm:$0xf]
      %v289 = vld [vmem:[%s245 + $0xac] sm:$0xf]
      %v290 = vld [vmem:[%s245 + $0xb0] sm:$0x1]
      %v291 = vld [vmem:[%s245 + $0xb4] sm:$0xf]
      %v292 = vld [vmem:[%s245 + $0xb8] sm:$0xf]
      %v293 = vld [vmem:[%s245 + $0xbc] sm:$0x1]
      %v294 = vld [vmem:[%s245 + $0xc0] sm:$0xf]
      %v295 = vld [vmem:[%s245 + $0xc4] sm:$0xf]
      %v296 = vld [vmem:[%s245 + $0xc8] sm:$0x1]
      %v297 = vld [vmem:[%s245 + $0xcc] sm:$0xf]
      %v298 = vld [vmem:[%s245 + $0xd0] sm:$0xf]
      %v299 = vld [vmem:[%s245 + $0xd4] sm:$0x1]
      %v332 = vunpack.c.l.b16 %v246
      %v333 = vunpack.c.l.b16 %v247
      %v334 = vunpack.c.l.b16 %v249
      %v335 = vunpack.c.l.b16 %v250
      %v336 = vunpack.c.l.b16 %v252
      %v337 = vunpack.c.l.b16 %v253
      %v338 = vunpack.c.l.b16 %v255
      %v339 = vunpack.c.l.b16 %v256
      %v340 = vunpack.c.l.b16 %v258
      %v341 = vunpack.c.l.b16 %v259
      %v342 = vunpack.c.l.b16 %v261
      %v343 = vunpack.c.l.b16 %v262
      %v344 = vunpack.c.l.b16 %v264
      %v345 = vunpack.c.l.b16 %v265
      %v346 = vunpack.c.l.b16 %v267
      %v347 = vunpack.c.l.b16 %v268
      %v348 = vunpack.c.l.b16 %v270
      %v349 = vunpack.c.l.b16 %v271
      %v350 = vunpack.c.l.b16 %v273
      %v351 = vunpack.c.l.b16 %v274
      %v352 = vunpack.c.l.b16 %v276
      %v353 = vunpack.c.l.b16 %v277
      %v354 = vunpack.c.l.b16 %v279
      %v355 = vunpack.c.l.b16 %v280
      %v356 = vunpack.c.l.b16 %v282
      %v357 = vunpack.c.l.b16 %v283
      %v358 = vunpack.c.l.b16 %v285
      %v359 = vunpack.c.l.b16 %v286
      %v360 = vunpack.c.l.b16 %v288
      %v361 = vunpack.c.l.b16 %v289
      %v362 = vunpack.c.l.b16 %v291
      %v363 = vunpack.c.l.b16 %v292
      %v364 = vpack.c.b16 %v333, %v332
      %v365 = vpack.c.b16 %v335, %v334
      %v366 = vpack.c.b16 %v337, %v336
      %v367 = vpack.c.b16 %v339, %v338
      %v368 = vpack.c.b16 %v341, %v340
      %v369 = vpack.c.b16 %v343, %v342
      %v370 = vpack.c.b16 %v345, %v344
      %v371 = vpack.c.b16 %v347, %v346
      %v372 = vpack.c.b16 %v349, %v348
      %v373 = vpack.c.b16 %v351, %v350
      %v374 = vpack.c.b16 %v353, %v352
      %v375 = vpack.c.b16 %v355, %v354
      %v376 = vpack.c.b16 %v357, %v356
      %v377 = vpack.c.b16 %v359, %v358
      %v378 = vpack.c.b16 %v361, %v360
      %v379 = vpack.c.b16 %v363, %v362
      %v396 = vunpack.c.l.b16 %v248
      %v397 = vunpack.c.l.b16 %v251
      %v398 = vunpack.c.l.b16 %v254
      %v399 = vunpack.c.l.b16 %v257
      %v400 = vunpack.c.l.b16 %v260
      %v401 = vunpack.c.l.b16 %v263
      %v402 = vunpack.c.l.b16 %v266
      %v403 = vunpack.c.l.b16 %v269
      %v404 = vunpack.c.l.b16 %v272
      %v405 = vunpack.c.l.b16 %v275
      %v406 = vunpack.c.l.b16 %v278
      %v407 = vunpack.c.l.b16 %v281
      %v408 = vunpack.c.l.b16 %v284
      %v409 = vunpack.c.l.b16 %v287
      %v410 = vunpack.c.l.b16 %v290
      %v411 = vunpack.c.l.b16 %v293
      %v412 = vpack.c.b16 %v396, %v396
      %v413 = vpack.c.b16 %v397, %v397
      %v414 = vpack.c.b16 %v398, %v398
      %v415 = vpack.c.b16 %v399, %v399
      %v416 = vpack.c.b16 %v400, %v400
      %v417 = vpack.c.b16 %v401, %v401
      %v418 = vpack.c.b16 %v402, %v402
      %v419 = vpack.c.b16 %v403, %v403
      %v420 = vpack.c.b16 %v404, %v404
      %v421 = vpack.c.b16 %v405, %v405
      %v422 = vpack.c.b16 %v406, %v406
      %v423 = vpack.c.b16 %v407, %v407
      %v424 = vpack.c.b16 %v408, %v408
      %v425 = vpack.c.b16 %v409, %v409
      %v426 = vpack.c.b16 %v410, %v410
      %v427 = vpack.c.b16 %v411, %v411
      %vm428 = vsmask.f32 7424
      %v430 = vshrl.u32 %v364, 16
      %v432 = vshll.u32 %v364, 16
      %v434 = vrot.slane %v432, 1
      %v435 = vor.u32 %v430, %v434
      %v437 = vshll.u32 %v412, 16
      %v439 = vrot.slane %v437, 1
      %v440 = vsel %vm428, %v435, %v439
      %v442 = vshrl.u32 %v365, 16
      %v444 = vshll.u32 %v365, 16
      %v446 = vrot.slane %v444, 1
      %v447 = vor.u32 %v442, %v446
      %v449 = vshll.u32 %v413, 16
      %v451 = vrot.slane %v449, 1
      %v452 = vsel %vm428, %v447, %v451
      %v454 = vshrl.u32 %v366, 16
      %v456 = vshll.u32 %v366, 16
      %v458 = vrot.slane %v456, 1
      %v459 = vor.u32 %v454, %v458
      %v461 = vshll.u32 %v414, 16
      %v463 = vrot.slane %v461, 1
      %v464 = vsel %vm428, %v459, %v463
      %v466 = vshrl.u32 %v367, 16
      %v468 = vshll.u32 %v367, 16
      %v470 = vrot.slane %v468, 1
      %v471 = vor.u32 %v466, %v470
      %v473 = vshll.u32 %v415, 16
      %v475 = vrot.slane %v473, 1
      %v476 = vsel %vm428, %v471, %v475
      %v478 = vshrl.u32 %v368, 16
      %v480 = vshll.u32 %v368, 16
      %v482 = vrot.slane %v480, 1
      %v483 = vor.u32 %v478, %v482
      %v485 = vshll.u32 %v416, 16
      %v487 = vrot.slane %v485, 1
      %v488 = vsel %vm428, %v483, %v487
      %v490 = vshrl.u32 %v369, 16
      %v492 = vshll.u32 %v369, 16
      %v494 = vrot.slane %v492, 1
      %v495 = vor.u32 %v490, %v494
      %v497 = vshll.u32 %v417, 16
      %v499 = vrot.slane %v497, 1
      %v500 = vsel %vm428, %v495, %v499
      %v502 = vshrl.u32 %v370, 16
      %v504 = vshll.u32 %v370, 16
      %v506 = vrot.slane %v504, 1
      %v507 = vor.u32 %v502, %v506
      %v509 = vshll.u32 %v418, 16
      %v511 = vrot.slane %v509, 1
      %v512 = vsel %vm428, %v507, %v511
      %v514 = vshrl.u32 %v371, 16
      %v516 = vshll.u32 %v371, 16
      %v518 = vrot.slane %v516, 1
      %v519 = vor.u32 %v514, %v518
      %v521 = vshll.u32 %v419, 16
      %v523 = vrot.slane %v521, 1
      %v524 = vsel %vm428, %v519, %v523
      %v526 = vshrl.u32 %v372, 16
      %v528 = vshll.u32 %v372, 16
      %v530 = vrot.slane %v528, 1
      %v531 = vor.u32 %v526, %v530
      %v533 = vshll.u32 %v420, 16
      %v535 = vrot.slane %v533, 1
      %v536 = vsel %vm428, %v531, %v535
      %v538 = vshrl.u32 %v373, 16
      %v540 = vshll.u32 %v373, 16
      %v542 = vrot.slane %v540, 1
      %v543 = vor.u32 %v538, %v542
      %v545 = vshll.u32 %v421, 16
      %v547 = vrot.slane %v545, 1
      %v548 = vsel %vm428, %v543, %v547
      %v550 = vshrl.u32 %v374, 16
      %v552 = vshll.u32 %v374, 16
      %v554 = vrot.slane %v552, 1
      %v555 = vor.u32 %v550, %v554
      %v557 = vshll.u32 %v422, 16
      %v559 = vrot.slane %v557, 1
      %v560 = vsel %vm428, %v555, %v559
      %v562 = vshrl.u32 %v375, 16
      %v564 = vshll.u32 %v375, 16
      %v566 = vrot.slane %v564, 1
      %v567 = vor.u32 %v562, %v566
      %v569 = vshll.u32 %v423, 16
      %v571 = vrot.slane %v569, 1
      %v572 = vsel %vm428, %v567, %v571
      %v574 = vshrl.u32 %v376, 16
      %v576 = vshll.u32 %v376, 16
      %v578 = vrot.slane %v576, 1
      %v579 = vor.u32 %v574, %v578
      %v581 = vshll.u32 %v424, 16
      %v583 = vrot.slane %v581, 1
      %v584 = vsel %vm428, %v579, %v583
      %v586 = vshrl.u32 %v377, 16
      %v588 = vshll.u32 %v377, 16
      %v590 = vrot.slane %v588, 1
      %v591 = vor.u32 %v586, %v590
      %v593 = vshll.u32 %v425, 16
      %v595 = vrot.slane %v593, 1
      %v596 = vsel %vm428, %v591, %v595
      %v598 = vshrl.u32 %v378, 16
      %v600 = vshll.u32 %v378, 16
      %v602 = vrot.slane %v600, 1
      %v603 = vor.u32 %v598, %v602
      %v605 = vshll.u32 %v426, 16
      %v607 = vrot.slane %v605, 1
      %v608 = vsel %vm428, %v603, %v607
      %v610 = vshrl.u32 %v379, 16
      %v612 = vshll.u32 %v379, 16
      %v614 = vrot.slane %v612, 1
      %v615 = vor.u32 %v610, %v614
      %v617 = vshll.u32 %v427, 16
      %v619 = vrot.slane %v617, 1
      %v620 = vsel %vm428, %v615, %v619
      %621 = vrot.lane.b32.xlu0 %v440, 3
      %v622 = vpop.permute.xlu0 %621
      %623 = vrot.lane.b32.xlu0 %v452, 3
      %v624 = vpop.permute.xlu0 %623
      %625 = vrot.lane.b32.xlu0 %v464, 3
      %v626 = vpop.permute.xlu0 %625
      %627 = vrot.lane.b32.xlu0 %v476, 3
      %v628 = vpop.permute.xlu0 %627
      %629 = vrot.lane.b32.xlu0 %v488, 3
      %v630 = vpop.permute.xlu0 %629
      %631 = vrot.lane.b32.xlu0 %v500, 3
      %v632 = vpop.permute.xlu0 %631
      %633 = vrot.lane.b32.xlu0 %v512, 3
      %v634 = vpop.permute.xlu0 %633
      %635 = vrot.lane.b32.xlu0 %v524, 3
      %v636 = vpop.permute.xlu0 %635
      %637 = vrot.lane.b32.xlu0 %v536, 3
      %v638 = vpop.permute.xlu0 %637
      %639 = vrot.lane.b32.xlu0 %v548, 3
      %v640 = vpop.permute.xlu0 %639
      %641 = vrot.lane.b32.xlu0 %v560, 3
      %v642 = vpop.permute.xlu0 %641
      %643 = vrot.lane.b32.xlu0 %v572, 3
      %v644 = vpop.permute.xlu0 %643
      %645 = vrot.lane.b32.xlu0 %v584, 3
      %v646 = vpop.permute.xlu0 %645
      %647 = vrot.lane.b32.xlu0 %v596, 3
      %v648 = vpop.permute.xlu0 %647
      %649 = vrot.lane.b32.xlu0 %v608, 3
      %v650 = vpop.permute.xlu0 %649
      %651 = vrot.lane.b32.xlu0 %v620, 3
      %v652 = vpop.permute.xlu0 %651
      %vm653 = vcmask 1046528
      %v654 = vrot.slane %v364, 1
      %v655 = vrot.slane %v412, 1
      %v656 = vsel %vm653, %v654, %v655
      %v657 = vrot.slane %v365, 1
      %v658 = vrot.slane %v413, 1
      %v659 = vsel %vm653, %v657, %v658
      %v660 = vrot.slane %v366, 1
      %v661 = vrot.slane %v414, 1
      %v662 = vsel %vm653, %v660, %v661
      %v663 = vrot.slane %v367, 1
      %v664 = vrot.slane %v415, 1
      %v665 = vsel %vm653, %v663, %v664
      %v666 = vrot.slane %v368, 1
      %v667 = vrot.slane %v416, 1
      %v668 = vsel %vm653, %v666, %v667
      %v669 = vrot.slane %v369, 1
      %v670 = vrot.slane %v417, 1
      %v671 = vsel %vm653, %v669, %v670
      %v672 = vrot.slane %v370, 1
      %v673 = vrot.slane %v418, 1
      %v674 = vsel %vm653, %v672, %v673
      %v675 = vrot.slane %v371, 1
      %v676 = vrot.slane %v419, 1
      %v677 = vsel %vm653, %v675, %v676
      %v678 = vrot.slane %v372, 1
      %v679 = vrot.slane %v420, 1
      %v680 = vsel %vm653, %v678, %v679
      %v681 = vrot.slane %v373, 1
      %v682 = vrot.slane %v421, 1
      %v683 = vsel %vm653, %v681, %v682
      %v684 = vrot.slane %v374, 1
      %v685 = vrot.slane %v422, 1
      %v686 = vsel %vm653, %v684, %v685
      %v687 = vrot.slane %v375, 1
      %v688 = vrot.slane %v423, 1
      %v689 = vsel %vm653, %v687, %v688
      %v690 = vrot.slane %v376, 1
      %v691 = vrot.slane %v424, 1
      %v692 = vsel %vm653, %v690, %v691
      %v693 = vrot.slane %v377, 1
      %v694 = vrot.slane %v425, 1
      %v695 = vsel %vm653, %v693, %v694
      %v696 = vrot.slane %v378, 1
      %v697 = vrot.slane %v426, 1
      %v698 = vsel %vm653, %v696, %v697
      %v699 = vrot.slane %v379, 1
      %v700 = vrot.slane %v427, 1
      %v701 = vsel %vm653, %v699, %v700
      %702 = vrot.lane.b32.xlu0 %v656, 6
      %v703 = vpop.permute.xlu0 %702
      %704 = vrot.lane.b32.xlu0 %v659, 6
      %v705 = vpop.permute.xlu0 %704
      %706 = vrot.lane.b32.xlu0 %v662, 6
      %v707 = vpop.permute.xlu0 %706
      %708 = vrot.lane.b32.xlu0 %v665, 6
      %v709 = vpop.permute.xlu0 %708
      %710 = vrot.lane.b32.xlu0 %v668, 6
      %v711 = vpop.permute.xlu0 %710
      %712 = vrot.lane.b32.xlu0 %v671, 6
      %v713 = vpop.permute.xlu0 %712
      %714 = vrot.lane.b32.xlu0 %v674, 6
      %v715 = vpop.permute.xlu0 %714
      %716 = vrot.lane.b32.xlu0 %v677, 6
      %v717 = vpop.permute.xlu0 %716
      %718 = vrot.lane.b32.xlu0 %v680, 6
      %v719 = vpop.permute.xlu0 %718
      %720 = vrot.lane.b32.xlu0 %v683, 6
      %v721 = vpop.permute.xlu0 %720
      %722 = vrot.lane.b32.xlu0 %v686, 6
      %v723 = vpop.permute.xlu0 %722
      %724 = vrot.lane.b32.xlu0 %v689, 6
      %v725 = vpop.permute.xlu0 %724
      %726 = vrot.lane.b32.xlu0 %v692, 6
      %v727 = vpop.permute.xlu0 %726
      %728 = vrot.lane.b32.xlu0 %v695, 6
      %v729 = vpop.permute.xlu0 %728
      %730 = vrot.lane.b32.xlu0 %v698, 6
      %v731 = vpop.permute.xlu0 %730
      %732 = vrot.lane.b32.xlu0 %v701, 6
      %v733 = vpop.permute.xlu0 %732
      %v736 = vunpack.c.l.b16 %v294
      %v737 = vunpack.c.l.b16 %v295
      %v738 = vpack.c.b16 %v737, %v736
      %739 = vrot.lane.b32.xlu0 %v365, 9
      %v740 = vpop.permute.xlu0 %739
      %741 = vrot.lane.b32.xlu0 %v366, 9
      %v742 = vpop.permute.xlu0 %741
      %743 = vrot.lane.b32.xlu0 %v367, 9
      %v744 = vpop.permute.xlu0 %743
      %745 = vrot.lane.b32.xlu0 %v368, 9
      %v746 = vpop.permute.xlu0 %745
      %747 = vrot.lane.b32.xlu0 %v369, 9
      %v748 = vpop.permute.xlu0 %747
      %749 = vrot.lane.b32.xlu0 %v370, 9
      %v750 = vpop.permute.xlu0 %749
      %751 = vrot.lane.b32.xlu0 %v371, 9
      %v752 = vpop.permute.xlu0 %751
      %753 = vrot.lane.b32.xlu0 %v372, 9
      %v754 = vpop.permute.xlu0 %753
      %755 = vrot.lane.b32.xlu0 %v373, 9
      %v756 = vpop.permute.xlu0 %755
      %757 = vrot.lane.b32.xlu0 %v374, 9
      %v758 = vpop.permute.xlu0 %757
      %759 = vrot.lane.b32.xlu0 %v375, 9
      %v760 = vpop.permute.xlu0 %759
      %761 = vrot.lane.b32.xlu0 %v376, 9
      %v762 = vpop.permute.xlu0 %761
      %763 = vrot.lane.b32.xlu0 %v377, 9
      %v764 = vpop.permute.xlu0 %763
      %765 = vrot.lane.b32.xlu0 %v378, 9
      %v766 = vpop.permute.xlu0 %765
      %767 = vrot.lane.b32.xlu0 %v379, 9
      %v768 = vpop.permute.xlu0 %767
      %769 = vrot.lane.b32.xlu0 %v738, 9
      %v770 = vpop.permute.xlu0 %769
      %v772 = vunpack.c.l.b16 %v296
      %v773 = vpack.c.b16 %v772, %v772
      %v775 = vshrl.u32 %v738, 16
      %v777 = vshll.u32 %v738, 16
      %v779 = vrot.slane %v777, 1
      %v780 = vor.u32 %v775, %v779
      %v782 = vshll.u32 %v773, 16
      %v784 = vrot.slane %v782, 1
      %v785 = vsel %vm428, %v780, %v784
      %786 = vrot.lane.b32.xlu0 %v452, 12
      %v787 = vpop.permute.xlu0 %786
      %788 = vrot.lane.b32.xlu0 %v464, 12
      %v789 = vpop.permute.xlu0 %788
      %790 = vrot.lane.b32.xlu0 %v476, 12
      %v791 = vpop.permute.xlu0 %790
      %792 = vrot.lane.b32.xlu0 %v488, 12
      %v793 = vpop.permute.xlu0 %792
      %794 = vrot.lane.b32.xlu0 %v500, 12
      %v795 = vpop.permute.xlu0 %794
      %796 = vrot.lane.b32.xlu0 %v512, 12
      %v797 = vpop.permute.xlu0 %796
      %798 = vrot.lane.b32.xlu0 %v524, 12
      %v799 = vpop.permute.xlu0 %798
      %800 = vrot.lane.b32.xlu0 %v536, 12
      %v801 = vpop.permute.xlu0 %800
      %802 = vrot.lane.b32.xlu0 %v548, 12
      %v803 = vpop.permute.xlu0 %802
      %804 = vrot.lane.b32.xlu0 %v560, 12
      %v805 = vpop.permute.xlu0 %804
      %806 = vrot.lane.b32.xlu0 %v572, 12
      %v807 = vpop.permute.xlu0 %806
      %808 = vrot.lane.b32.xlu0 %v584, 12
      %v809 = vpop.permute.xlu0 %808
      %810 = vrot.lane.b32.xlu0 %v596, 12
      %v811 = vpop.permute.xlu0 %810
      %812 = vrot.lane.b32.xlu0 %v608, 12
      %v813 = vpop.permute.xlu0 %812
      %814 = vrot.lane.b32.xlu0 %v620, 12
      %v815 = vpop.permute.xlu0 %814
      %816 = vrot.lane.b32.xlu0 %v785, 12
      %v817 = vpop.permute.xlu0 %816
      %v818 = vrot.slane %v738, 1
      %v819 = vrot.slane %v773, 1
      %v820 = vsel %vm653, %v818, %v819
      %821 = vrot.lane.b32.xlu0 %v659, 15
      %v822 = vpop.permute.xlu0 %821
      %823 = vrot.lane.b32.xlu0 %v662, 15
      %v824 = vpop.permute.xlu0 %823
      %825 = vrot.lane.b32.xlu0 %v665, 15
      %v826 = vpop.permute.xlu0 %825
      %827 = vrot.lane.b32.xlu0 %v668, 15
      %v828 = vpop.permute.xlu0 %827
      %829 = vrot.lane.b32.xlu0 %v671, 15
      %v830 = vpop.permute.xlu0 %829
      %831 = vrot.lane.b32.xlu0 %v674, 15
      %v832 = vpop.permute.xlu0 %831
      %833 = vrot.lane.b32.xlu0 %v677, 15
      %v834 = vpop.permute.xlu0 %833
      %835 = vrot.lane.b32.xlu0 %v680, 15
      %v836 = vpop.permute.xlu0 %835
      %837 = vrot.lane.b32.xlu0 %v683, 15
      %v838 = vpop.permute.xlu0 %837
      %839 = vrot.lane.b32.xlu0 %v686, 15
      %v840 = vpop.permute.xlu0 %839
      %841 = vrot.lane.b32.xlu0 %v689, 15
      %v842 = vpop.permute.xlu0 %841
      %843 = vrot.lane.b32.xlu0 %v692, 15
      %v844 = vpop.permute.xlu0 %843
      %845 = vrot.lane.b32.xlu0 %v695, 15
      %v846 = vpop.permute.xlu0 %845
      %847 = vrot.lane.b32.xlu0 %v698, 15
      %v848 = vpop.permute.xlu0 %847
      %849 = vrot.lane.b32.xlu0 %v701, 15
      %v850 = vpop.permute.xlu0 %849
      %851 = vrot.lane.b32.xlu0 %v820, 15
      %v852 = vpop.permute.xlu0 %851
      %v855 = vunpack.c.l.b16 %v297
      %v856 = vunpack.c.l.b16 %v298
      %v857 = vpack.c.b16 %v856, %v855
      %858 = vrot.lane.b32.xlu0 %v366, 18
      %v859 = vpop.permute.xlu0 %858
      %860 = vrot.lane.b32.xlu0 %v367, 18
      %v861 = vpop.permute.xlu0 %860
      %862 = vrot.lane.b32.xlu0 %v368, 18
      %v863 = vpop.permute.xlu0 %862
      %864 = vrot.lane.b32.xlu0 %v369, 18
      %v865 = vpop.permute.xlu0 %864
      %866 = vrot.lane.b32.xlu0 %v370, 18
      %v867 = vpop.permute.xlu0 %866
      %868 = vrot.lane.b32.xlu0 %v371, 18
      %v869 = vpop.permute.xlu0 %868
      %870 = vrot.lane.b32.xlu0 %v372, 18
      %v871 = vpop.permute.xlu0 %870
      %872 = vrot.lane.b32.xlu0 %v373, 18
      %v873 = vpop.permute.xlu0 %872
      %874 = vrot.lane.b32.xlu0 %v374, 18
      %v875 = vpop.permute.xlu0 %874
      %876 = vrot.lane.b32.xlu0 %v375, 18
      %v877 = vpop.permute.xlu0 %876
      %878 = vrot.lane.b32.xlu0 %v376, 18
      %v879 = vpop.permute.xlu0 %878
      %880 = vrot.lane.b32.xlu0 %v377, 18
      %v881 = vpop.permute.xlu0 %880
      %882 = vrot.lane.b32.xlu0 %v378, 18
      %v883 = vpop.permute.xlu0 %882
      %884 = vrot.lane.b32.xlu0 %v379, 18
      %v885 = vpop.permute.xlu0 %884
      %886 = vrot.lane.b32.xlu0 %v738, 18
      %v887 = vpop.permute.xlu0 %886
      %888 = vrot.lane.b32.xlu0 %v857, 18
      %v889 = vpop.permute.xlu0 %888
      %v891 = vunpack.c.l.b16 %v299
      %v892 = vpack.c.b16 %v891, %v891
      %v894 = vshrl.u32 %v857, 16
      %v896 = vshll.u32 %v857, 16
      %v898 = vrot.slane %v896, 1
      %v899 = vor.u32 %v894, %v898
      %v901 = vshll.u32 %v892, 16
      %v903 = vrot.slane %v901, 1
      %v904 = vsel %vm428, %v899, %v903
      %905 = vrot.lane.b32.xlu0 %v464, 21
      %v906 = vpop.permute.xlu0 %905
      %907 = vrot.lane.b32.xlu0 %v476, 21
      %v908 = vpop.permute.xlu0 %907
      %909 = vrot.lane.b32.xlu0 %v488, 21
      %v910 = vpop.permute.xlu0 %909
      %911 = vrot.lane.b32.xlu0 %v500, 21
      %v912 = vpop.permute.xlu0 %911
      %913 = vrot.lane.b32.xlu0 %v512, 21
      %v914 = vpop.permute.xlu0 %913
      %915 = vrot.lane.b32.xlu0 %v524, 21
      %v916 = vpop.permute.xlu0 %915
      %917 = vrot.lane.b32.xlu0 %v536, 21
      %v918 = vpop.permute.xlu0 %917
      %919 = vrot.lane.b32.xlu0 %v548, 21
      %v920 = vpop.permute.xlu0 %919
      %921 = vrot.lane.b32.xlu0 %v560, 21
      %v922 = vpop.permute.xlu0 %921
      %923 = vrot.lane.b32.xlu0 %v572, 21
      %v924 = vpop.permute.xlu0 %923
      %925 = vrot.lane.b32.xlu0 %v584, 21
      %v926 = vpop.permute.xlu0 %925
      %927 = vrot.lane.b32.xlu0 %v596, 21
      %v928 = vpop.permute.xlu0 %927
      %929 = vrot.lane.b32.xlu0 %v608, 21
      %v930 = vpop.permute.xlu0 %929
      %931 = vrot.lane.b32.xlu0 %v620, 21
      %v932 = vpop.permute.xlu0 %931
      %933 = vrot.lane.b32.xlu0 %v785, 21
      %v934 = vpop.permute.xlu0 %933
      %935 = vrot.lane.b32.xlu0 %v904, 21
      %v936 = vpop.permute.xlu0 %935
      %v937 = vrot.slane %v857, 1
      %v938 = vrot.slane %v892, 1
      %v939 = vsel %vm653, %v937, %v938
      %940 = vrot.lane.b32.xlu0 %v662, 24
      %v941 = vpop.permute.xlu0 %940
      %942 = vrot.lane.b32.xlu0 %v665, 24
      %v943 = vpop.permute.xlu0 %942
      %944 = vrot.lane.b32.xlu0 %v668, 24
      %v945 = vpop.permute.xlu0 %944
      %946 = vrot.lane.b32.xlu0 %v671, 24
      %v947 = vpop.permute.xlu0 %946
      %948 = vrot.lane.b32.xlu0 %v674, 24
      %v949 = vpop.permute.xlu0 %948
      %950 = vrot.lane.b32.xlu0 %v677, 24
      %v951 = vpop.permute.xlu0 %950
      %952 = vrot.lane.b32.xlu0 %v680, 24
      %v953 = vpop.permute.xlu0 %952
      %954 = vrot.lane.b32.xlu0 %v683, 24
      %v955 = vpop.permute.xlu0 %954
      %956 = vrot.lane.b32.xlu0 %v686, 24
      %v957 = vpop.permute.xlu0 %956
      %958 = vrot.lane.b32.xlu0 %v689, 24
      %v959 = vpop.permute.xlu0 %958
      %960 = vrot.lane.b32.xlu0 %v692, 24
      %v961 = vpop.permute.xlu0 %960
      %962 = vrot.lane.b32.xlu0 %v695, 24
      %v963 = vpop.permute.xlu0 %962
      %964 = vrot.lane.b32.xlu0 %v698, 24
      %v965 = vpop.permute.xlu0 %964
      %966 = vrot.lane.b32.xlu0 %v701, 24
      %v967 = vpop.permute.xlu0 %966
      %968 = vrot.lane.b32.xlu0 %v820, 24
      %v969 = vpop.permute.xlu0 %968
      %970 = vrot.lane.b32.xlu0 %v939, 24
      %v971 = vpop.permute.xlu0 %970
      %vm972 = vcmask 23552
      %v974 = vsel %vm972, %v364, %v622
      %v976 = vsel %vm972, %v365, %v624
      %v978 = vsel %vm972, %v366, %v626
      %v980 = vsel %vm972, %v367, %v628
      %v982 = vsel %vm972, %v368, %v630
      %v984 = vsel %vm972, %v369, %v632
      %v986 = vsel %vm972, %v370, %v634
      %v988 = vsel %vm972, %v371, %v636
      %v990 = vsel %vm972, %v372, %v638
      %v992 = vsel %vm972, %v373, %v640
      %v994 = vsel %vm972, %v374, %v642
      %v996 = vsel %vm972, %v375, %v644
      %v998 = vsel %vm972, %v376, %v646
      %v1000 = vsel %vm972, %v377, %v648
      %v1002 = vsel %vm972, %v378, %v650
      %v1004 = vsel %vm972, %v379, %v652
      %vm1005 = vcmask 48128
      %v1007 = vsel %vm1005, %v974, %v703
      %v1009 = vsel %vm1005, %v976, %v705
      %v1011 = vsel %vm1005, %v978, %v707
      %v1013 = vsel %vm1005, %v980, %v709
      %v1015 = vsel %vm1005, %v982, %v711
      %v1017 = vsel %vm1005, %v984, %v713
      %v1019 = vsel %vm1005, %v986, %v715
      %v1021 = vsel %vm1005, %v988, %v717
      %v1023 = vsel %vm1005, %v990, %v719
      %v1025 = vsel %vm1005, %v992, %v721
      %v1027 = vsel %vm1005, %v994, %v723
      %v1029 = vsel %vm1005, %v996, %v725
      %v1031 = vsel %vm1005, %v998, %v727
      %v1033 = vsel %vm1005, %v1000, %v729
      %v1035 = vsel %vm1005, %v1002, %v731
      %v1037 = vsel %vm1005, %v1004, %v733
      %vm1038 = vcmask 72704
      %v1040 = vsel %vm1038, %v1007, %v740
      %v1042 = vsel %vm1038, %v1009, %v742
      %v1044 = vsel %vm1038, %v1011, %v744
      %v1046 = vsel %vm1038, %v1013, %v746
      %v1048 = vsel %vm1038, %v1015, %v748
      %v1050 = vsel %vm1038, %v1017, %v750
      %v1052 = vsel %vm1038, %v1019, %v752
      %v1054 = vsel %vm1038, %v1021, %v754
      %v1056 = vsel %vm1038, %v1023, %v756
      %v1058 = vsel %vm1038, %v1025, %v758
      %v1060 = vsel %vm1038, %v1027, %v760
      %v1062 = vsel %vm1038, %v1029, %v762
      %v1064 = vsel %vm1038, %v1031, %v764
      %v1066 = vsel %vm1038, %v1033, %v766
      %v1068 = vsel %vm1038, %v1035, %v768
      %v1070 = vsel %vm1038, %v1037, %v770
      %vm1071 = vcmask 97280
      %v1073 = vsel %vm1071, %v1040, %v787
      %v1075 = vsel %vm1071, %v1042, %v789
      %v1077 = vsel %vm1071, %v1044, %v791
      %v1079 = vsel %vm1071, %v1046, %v793
      %v1081 = vsel %vm1071, %v1048, %v795
      %v1083 = vsel %vm1071, %v1050, %v797
      %v1085 = vsel %vm1071, %v1052, %v799
      %v1087 = vsel %vm1071, %v1054, %v801
      %v1089 = vsel %vm1071, %v1056, %v803
      %v1091 = vsel %vm1071, %v1058, %v805
      %v1093 = vsel %vm1071, %v1060, %v807
      %v1095 = vsel %vm1071, %v1062, %v809
      %v1097 = vsel %vm1071, %v1064, %v811
      %v1099 = vsel %vm1071, %v1066, %v813
      %v1101 = vsel %vm1071, %v1068, %v815
      %v1103 = vsel %vm1071, %v1070, %v817
      %vm1104 = vcmask 121856
      %v1106 = vsel %vm1104, %v1073, %v822
      %v1108 = vsel %vm1104, %v1075, %v824
      %v1110 = vsel %vm1104, %v1077, %v826
      %v1112 = vsel %vm1104, %v1079, %v828
      %v1114 = vsel %vm1104, %v1081, %v830
      %v1116 = vsel %vm1104, %v1083, %v832
      %v1118 = vsel %vm1104, %v1085, %v834
      %v1120 = vsel %vm1104, %v1087, %v836
      %v1122 = vsel %vm1104, %v1089, %v838
      %v1124 = vsel %vm1104, %v1091, %v840
      %v1126 = vsel %vm1104, %v1093, %v842
      %v1128 = vsel %vm1104, %v1095, %v844
      %v1130 = vsel %vm1104, %v1097, %v846
      %v1132 = vsel %vm1104, %v1099, %v848
      %v1134 = vsel %vm1104, %v1101, %v850
      %v1136 = vsel %vm1104, %v1103, %v852
      %vm1137 = vcmask 146432
      %v1139 = vsel %vm1137, %v1106, %v859
      %v1141 = vsel %vm1137, %v1108, %v861
      %v1143 = vsel %vm1137, %v1110, %v863
      %v1145 = vsel %vm1137, %v1112, %v865
      %v1147 = vsel %vm1137, %v1114, %v867
      %v1149 = vsel %vm1137, %v1116, %v869
      %v1151 = vsel %vm1137, %v1118, %v871
      %v1153 = vsel %vm1137, %v1120, %v873
      %v1155 = vsel %vm1137, %v1122, %v875
      %v1157 = vsel %vm1137, %v1124, %v877
      %v1159 = vsel %vm1137, %v1126, %v879
      %v1161 = vsel %vm1137, %v1128, %v881
      %v1163 = vsel %vm1137, %v1130, %v883
      %v1165 = vsel %vm1137, %v1132, %v885
      %v1167 = vsel %vm1137, %v1134, %v887
      %v1169 = vsel %vm1137, %v1136, %v889
      %vm1170 = vcmask 171008
      %v1172 = vsel %vm1170, %v1139, %v906
      %v1174 = vsel %vm1170, %v1141, %v908
      %v1176 = vsel %vm1170, %v1143, %v910
      %v1178 = vsel %vm1170, %v1145, %v912
      %v1180 = vsel %vm1170, %v1147, %v914
      %v1182 = vsel %vm1170, %v1149, %v916
      %v1184 = vsel %vm1170, %v1151, %v918
      %v1186 = vsel %vm1170, %v1153, %v920
      %v1188 = vsel %vm1170, %v1155, %v922
      %v1190 = vsel %vm1170, %v1157, %v924
      %v1192 = vsel %vm1170, %v1159, %v926
      %v1194 = vsel %vm1170, %v1161, %v928
      %v1196 = vsel %vm1170, %v1163, %v930
      %v1198 = vsel %vm1170, %v1165, %v932
      %v1200 = vsel %vm1170, %v1167, %v934
      %v1202 = vsel %vm1170, %v1169, %v936
      %vm1203 = vcmask 195584
      %v1205 = vsel %vm1203, %v1172, %v941
      %v1207 = vsel %vm1203, %v1174, %v943
      %v1209 = vsel %vm1203, %v1176, %v945
      %v1211 = vsel %vm1203, %v1178, %v947
      %v1213 = vsel %vm1203, %v1180, %v949
      %v1215 = vsel %vm1203, %v1182, %v951
      %v1217 = vsel %vm1203, %v1184, %v953
      %v1219 = vsel %vm1203, %v1186, %v955
      %v1221 = vsel %vm1203, %v1188, %v957
      %v1223 = vsel %vm1203, %v1190, %v959
      %v1225 = vsel %vm1203, %v1192, %v961
      %v1227 = vsel %vm1203, %v1194, %v963
      %v1229 = vsel %vm1203, %v1196, %v965
      %v1231 = vsel %vm1203, %v1198, %v967
      %v1233 = vsel %vm1203, %v1200, %v969
      %v1235 = vsel %vm1203, %v1202, %v971
      %v1236 = vld [vmem:[%s1] sm:$0xf]
      %v1237 = vld [vmem:[%s1 + $0x4] sm:$0xf]
      %v1238 = vld [vmem:[%s1 + $0x8] sm:$0xf]
      %v1239 = vld [vmem:[%s1 + $0xc] sm:$0x3]
      %v1240 = vld [vmem:[%s2] sm:$0x1]
      %v1242 = vlaneseq
      %v1243 = vshrl.u32 %v1242, 7
      %v1244 = vsub.s32 0, %v1243
      %v1245 = vrot.slane %v1240, %v1244
      %v1251 = vunpack.c.l.b16 %v1236
      %v1252 = vunpack.c.l.b16 %v1237
      %v1253 = vunpack.c.l.b16 %v1238
      %v1254 = vunpack.c.l.b16 %v1239
      %v1255 = vpack.c.b16 %v1252, %v1251
      %v1256 = vpack.c.b16 %v1254, %v1253
      %vm1258 = vcmask 220160
      %v1259 = vsel %vm1258, %v1205, 0
      %v1261 = vsel %vm1258, %v1207, 0
      %v1263 = vsel %vm1258, %v1209, 0
      %v1265 = vsel %vm1258, %v1211, 0
      %v1267 = vsel %vm1258, %v1213, 0
      %v1269 = vsel %vm1258, %v1215, 0
      %v1271 = vsel %vm1258, %v1217, 0
      %v1273 = vsel %vm1258, %v1219, 0
      %v1275 = vsel %vm1258, %v1221, 0
      %v1277 = vsel %vm1258, %v1223, 0
      %v1279 = vsel %vm1258, %v1225, 0
      %v1281 = vsel %vm1258, %v1227, 0
      %v1283 = vsel %vm1258, %v1229, 0
      %v1285 = vsel %vm1258, %v1231, 0
      %v1287 = vsel %vm1258, %v1233, 0
      %v1289 = vsel %vm1258, %v1235, 0
      %vm1291 = vcmask 1044480
      %vm1292 = vcmask 1045504
      %v1293 = vsel %vm1291, 4294967295, 65535
      %v1294 = vsel %vm1292, %v1293, 0
      %v1296 = vand.u32 %v1256, %v1294
      %1298 = vmatprep.subr.bf16.mxu0 0
      %1299 = vmatpush1.bf16.msra.mxu0 %v1255
      %1300 = vmatprep.subr.bf16.mxu0 0
      %1301 = vmatpush1.bf16.msra.mxu0 %v1296
      %1302 = vmatprep.subr.bf16.mxu0 0
      %1303 = vmatpush1.bf16.msra.mxu0 0
      %1304 = vmatprep.subr.bf16.mxu0 0
      %1305 = vmatpush1.bf16.msra.mxu0 0
      %1306 = vmatprep.subr.bf16.mxu0 0
      %1307 = vmatpush1.bf16.msra.mxu0 0
      %1308 = vmatprep.subr.bf16.mxu0 0
      %1309 = vmatpush1.bf16.msra.mxu0 0
      %1310 = vmatprep.subr.bf16.mxu0 0
      %1311 = vmatpush1.bf16.msra.mxu0 0
      %1312 = vmatprep.subr.bf16.mxu0 0
      %1313 = vmatpush1.bf16.msra.mxu0 0
      %1314 = vmatprep.subr.bf16.mxu0 0
      %1315 = vmatpush1.bf16.msra.mxu0 0
      %1316 = vmatprep.subr.bf16.mxu0 0
      %1317 = vmatpush1.bf16.msra.mxu0 0
      %1318 = vmatprep.subr.bf16.mxu0 0
      %1319 = vmatpush1.bf16.msra.mxu0 0
      %1320 = vmatprep.subr.bf16.mxu0 0
      %1321 = vmatpush1.bf16.msra.mxu0 0
      %1322 = vmatprep.subr.bf16.mxu0 0
      %1323 = vmatpush1.bf16.msra.mxu0 0
      %1324 = vmatprep.subr.bf16.mxu0 0
      %1325 = vmatpush1.bf16.msra.mxu0 0
      %1326 = vmatprep.subr.bf16.mxu0 0
      %1327 = vmatpush1.bf16.msra.mxu0 0
      %1328 = vmatprep.subr.bf16.mxu0 0
      %1329 = vmatpush1.bf16.msra.mxu0 0
      %1330 = vmatprep.mubr.bf16.mxu0 0
      %1331 = vmatmul.mubr.bf16.gmra.mrb[0].mxu0 %v1259
      %v1332 = vpop.f32.mrb[0].mxu0
      %v1333 = vadd.f32 %v1245, %v1332
      %v1334 = vpop.f32.mrb[0].mxu0
      %v1335 = vpop.f32.mrb[0].mxu0
      %v1336 = vadd.f32 %v1245, %v1335
      %v1337 = vpop.f32.mrb[0].mxu0
      %1338 = vmatprep.mubr.bf16.mxu0 0
      %1339 = vmatmul.mubr.bf16.gmra.mrb[0].mxu0 %v1261
      %v1340 = vpop.f32.mrb[0].mxu0
      %v1341 = vadd.f32 %v1245, %v1340
      %v1342 = vpop.f32.mrb[0].mxu0
      %v1343 = vpop.f32.mrb[0].mxu0
      %v1344 = vadd.f32 %v1245, %v1343
      %v1345 = vpop.f32.mrb[0].mxu0
      %1346 = vmatprep.mubr.bf16.mxu0 0
      %1347 = vmatmul.mubr.bf16.gmra.mrb[0].mxu0 %v1263
      %v1348 = vpop.f32.mrb[0].mxu0
      %v1349 = vadd.f32 %v1245, %v1348
      %v1350 = vpop.f32.mrb[0].mxu0
      %v1351 = vpop.f32.mrb[0].mxu0
      %v1352 = vadd.f32 %v1245, %v1351
      %v1353 = vpop.f32.mrb[0].mxu0
      %1354 = vmatprep.mubr.bf16.mxu0 0
      %1355 = vmatmul.mubr.bf16.gmra.mrb[0].mxu0 %v1265
      %v1356 = vpop.f32.mrb[0].mxu0
      %v1357 = vadd.f32 %v1245, %v1356
      %v1358 = vpop.f32.mrb[0].mxu0
      %v1359 = vpop.f32.mrb[0].mxu0
      %v1360 = vadd.f32 %v1245, %v1359
      %v1361 = vpop.f32.mrb[0].mxu0
      %1362 = vmatprep.mubr.bf16.mxu0 0
      %1363 = vmatmul.mubr.bf16.gmra.mrb[0].mxu0 %v1267
      %v1364 = vpop.f32.mrb[0].mxu0
      %v1365 = vadd.f32 %v1245, %v1364
      %v1366 = vpop.f32.mrb[0].mxu0
      %v1367 = vpop.f32.mrb[0].mxu0
      %v1368 = vadd.f32 %v1245, %v1367
      %v1369 = vpop.f32.mrb[0].mxu0
      %1370 = vmatprep.mubr.bf16.mxu0 0
      %1371 = vmatmul.mubr.bf16.gmra.mrb[0].mxu0 %v1269
      %v1372 = vpop.f32.mrb[0].mxu0
      %v1373 = vadd.f32 %v1245, %v1372
      %v1374 = vpop.f32.mrb[0].mxu0
      %v1375 = vpop.f32.mrb[0].mxu0
      %v1376 = vadd.f32 %v1245, %v1375
      %v1377 = vpop.f32.mrb[0].mxu0
      %1378 = vmatprep.mubr.bf16.mxu0 0
      %1379 = vmatmul.mubr.bf16.gmra.mrb[0].mxu0 %v1271
      %v1380 = vpop.f32.mrb[0].mxu0
      %v1381 = vadd.f32 %v1245, %v1380
      %v1382 = vpop.f32.mrb[0].mxu0
      %v1383 = vpop.f32.mrb[0].mxu0
      %v1384 = vadd.f32 %v1245, %v1383
      %v1385 = vpop.f32.mrb[0].mxu0
      %1386 = vmatprep.mubr.bf16.mxu0 0
      %1387 = vmatmul.mubr.bf16.gmra.mrb[0].mxu0 %v1273
      %v1388 = vpop.f32.mrb[0].mxu0
      %v1389 = vadd.f32 %v1245, %v1388
      %v1390 = vpop.f32.mrb[0].mxu0
      %v1391 = vpop.f32.mrb[0].mxu0
      %v1392 = vadd.f32 %v1245, %v1391
      %v1393 = vpop.f32.mrb[0].mxu0
      %1394 = vmatprep.mubr.bf16.mxu0 0
      %1395 = vmatmul.mubr.bf16.gmra.mrb[0].mxu0 %v1275
      %v1396 = vpop.f32.mrb[0].mxu0
      %v1397 = vadd.f32 %v1245, %v1396
      %v1398 = vpop.f32.mrb[0].mxu0
      %v1399 = vpop.f32.mrb[0].mxu0
      %v1400 = vadd.f32 %v1245, %v1399
      %v1401 = vpop.f32.mrb[0].mxu0
      %1402 = vmatprep.mubr.bf16.mxu0 0
      %1403 = vmatmul.mubr.bf16.gmra.mrb[0].mxu0 %v1277
      %v1404 = vpop.f32.mrb[0].mxu0
      %v1405 = vadd.f32 %v1245, %v1404
      %v1406 = vpop.f32.mrb[0].mxu0
      %v1407 = vpop.f32.mrb[0].mxu0
      %v1408 = vadd.f32 %v1245, %v1407
      %v1409 = vpop.f32.mrb[0].mxu0
      %1410 = vmatprep.mubr.bf16.mxu0 0
      %1411 = vmatmul.mubr.bf16.gmra.mrb[0].mxu0 %v1279
      %v1412 = vpop.f32.mrb[0].mxu0
      %v1413 = vadd.f32 %v1245, %v1412
      %v1414 = vpop.f32.mrb[0].mxu0
      %v1415 = vpop.f32.mrb[0].mxu0
      %v1416 = vadd.f32 %v1245, %v1415
      %v1417 = vpop.f32.mrb[0].mxu0
      %1418 = vmatprep.mubr.bf16.mxu0 0
      %1419 = vmatmul.mubr.bf16.gmra.mrb[0].mxu0 %v1281
      %v1420 = vpop.f32.mrb[0].mxu0
      %v1421 = vadd.f32 %v1245, %v1420
      %v1422 = vpop.f32.mrb[0].mxu0
      %v1423 = vpop.f32.mrb[0].mxu0
      %v1424 = vadd.f32 %v1245, %v1423
      %v1425 = vpop.f32.mrb[0].mxu0
      %1426 = vmatprep.mubr.bf16.mxu0 0
      %1427 = vmatmul.mubr.bf16.gmra.mrb[0].mxu0 %v1283
      %v1428 = vpop.f32.mrb[0].mxu0
      %v1429 = vadd.f32 %v1245, %v1428
      %v1430 = vpop.f32.mrb[0].mxu0
      %v1431 = vpop.f32.mrb[0].mxu0
      %v1432 = vadd.f32 %v1245, %v1431
      %v1433 = vpop.f32.mrb[0].mxu0
      %1434 = vmatprep.mubr.bf16.mxu0 0
      %1435 = vmatmul.mubr.bf16.gmra.mrb[0].mxu0 %v1285
      %v1436 = vpop.f32.mrb[0].mxu0
      %v1437 = vadd.f32 %v1245, %v1436
      %v1438 = vpop.f32.mrb[0].mxu0
      %v1439 = vpop.f32.mrb[0].mxu0
      %v1440 = vadd.f32 %v1245, %v1439
      %v1441 = vpop.f32.mrb[0].mxu0
      %1442 = vmatprep.mubr.bf16.mxu0 0
      %1443 = vmatmul.mubr.bf16.gmra.mrb[0].mxu0 %v1287
      %v1444 = vpop.f32.mrb[0].mxu0
      %v1445 = vadd.f32 %v1245, %v1444
      %v1446 = vpop.f32.mrb[0].mxu0
      %v1447 = vpop.f32.mrb[0].mxu0
      %v1448 = vadd.f32 %v1245, %v1447
      %v1449 = vpop.f32.mrb[0].mxu0
      %1450 = vmatprep.mubr.bf16.mxu0 0
      %1451 = vmatmul.mubr.bf16.gmra.mrb[0].mxu0 %v1289
      %v1452 = vpop.f32.mrb[0].mxu0
      %v1453 = vadd.f32 %v1245, %v1452
      %v1454 = vpop.f32.mrb[0].mxu0
      %v1455 = vpop.f32.mrb[0].mxu0
      %v1456 = vadd.f32 %v1245, %v1455
      %v1457 = vpop.f32.mrb[0].mxu0
      %1458 = vdwg.mxu0
      %v1459 = vmax.f32 %v1333, 0.0
      %v1460 = vmax.f32 %v1336, 0.0
      %v1461 = vmax.f32 %v1341, 0.0
      %v1462 = vmax.f32 %v1344, 0.0
      %v1463 = vmax.f32 %v1349, 0.0
      %v1464 = vmax.f32 %v1352, 0.0
      %v1465 = vmax.f32 %v1357, 0.0
      %v1466 = vmax.f32 %v1360, 0.0
      %v1467 = vmax.f32 %v1365, 0.0
      %v1468 = vmax.f32 %v1368, 0.0
      %v1469 = vmax.f32 %v1373, 0.0
      %v1470 = vmax.f32 %v1376, 0.0
      %v1471 = vmax.f32 %v1381, 0.0
      %v1472 = vmax.f32 %v1384, 0.0
      %v1473 = vmax.f32 %v1389, 0.0
      %v1474 = vmax.f32 %v1392, 0.0
      %v1475 = vmax.f32 %v1397, 0.0
      %v1476 = vmax.f32 %v1400, 0.0
      %v1477 = vmax.f32 %v1405, 0.0
      %v1478 = vmax.f32 %v1408, 0.0
      %v1479 = vmax.f32 %v1413, 0.0
      %v1480 = vmax.f32 %v1416, 0.0
      %v1481 = vmax.f32 %v1421, 0.0
      %v1482 = vmax.f32 %v1424, 0.0
      %v1483 = vmax.f32 %v1429, 0.0
      %v1484 = vmax.f32 %v1432, 0.0
      %v1485 = vmax.f32 %v1437, 0.0
      %v1486 = vmax.f32 %v1440, 0.0
      %v1487 = vmax.f32 %v1445, 0.0
      %v1488 = vmax.f32 %v1448, 0.0
      %v1489 = vmax.f32 %v1453, 0.0
      %v1490 = vmax.f32 %v1456, 0.0
      %v1491 = vld [vmem:[#allocation2] sm:$0x1]
      %vm1492 = vcmask 261120
      %v1493 = vsel %vm1492, %v1459, 0.0
      %v1494 = vsel %vm1492, %v1460, 0.0
      %v1495 = vadd.f32 %v1493, %v1494
      %v1496 = vsel %vm1492, %v1461, 0.0
      %v1497 = vadd.f32 %v1495, %v1496
      %v1498 = vsel %vm1492, %v1462, 0.0
      %v1499 = vadd.f32 %v1497, %v1498
      %v1500 = vsel %vm1492, %v1463, 0.0
      %v1501 = vadd.f32 %v1499, %v1500
      %v1502 = vsel %vm1492, %v1464, 0.0
      %v1503 = vadd.f32 %v1501, %v1502
      %v1504 = vsel %vm1492, %v1465, 0.0
      %v1505 = vadd.f32 %v1503, %v1504
      %v1506 = vsel %vm1492, %v1466, 0.0
      %v1507 = vadd.f32 %v1505, %v1506
      %v1508 = vsel %vm1492, %v1467, 0.0
      %v1509 = vadd.f32 %v1507, %v1508
      %v1510 = vsel %vm1492, %v1468, 0.0
      %v1511 = vadd.f32 %v1509, %v1510
      %v1512 = vsel %vm1492, %v1469, 0.0
      %v1513 = vadd.f32 %v1511, %v1512
      %v1514 = vsel %vm1492, %v1470, 0.0
      %v1515 = vadd.f32 %v1513, %v1514
      %v1516 = vsel %vm1492, %v1471, 0.0
      %v1517 = vadd.f32 %v1515, %v1516
      %v1518 = vsel %vm1492, %v1472, 0.0
      %v1519 = vadd.f32 %v1517, %v1518
      %v1520 = vsel %vm1492, %v1473, 0.0
      %v1521 = vadd.f32 %v1519, %v1520
      %v1522 = vsel %vm1492, %v1474, 0.0
      %v1523 = vadd.f32 %v1521, %v1522
      %v1524 = vsel %vm1492, %v1475, 0.0
      %v1525 = vadd.f32 %v1523, %v1524
      %v1526 = vsel %vm1492, %v1476, 0.0
      %v1527 = vadd.f32 %v1525, %v1526
      %v1528 = vsel %vm1492, %v1477, 0.0
      %v1529 = vadd.f32 %v1527, %v1528
      %v1530 = vsel %vm1492, %v1478, 0.0
      %v1531 = vadd.f32 %v1529, %v1530
      %v1532 = vsel %vm1492, %v1479, 0.0
      %v1533 = vadd.f32 %v1531, %v1532
      %v1534 = vsel %vm1492, %v1480, 0.0
      %v1535 = vadd.f32 %v1533, %v1534
      %v1536 = vsel %vm1492, %v1481, 0.0
      %v1537 = vadd.f32 %v1535, %v1536
      %v1538 = vsel %vm1492, %v1482, 0.0
      %v1539 = vadd.f32 %v1537, %v1538
      %v1540 = vsel %vm1492, %v1483, 0.0
      %v1541 = vadd.f32 %v1539, %v1540
      %v1542 = vsel %vm1492, %v1484, 0.0
      %v1543 = vadd.f32 %v1541, %v1542
      %v1544 = vsel %vm1492, %v1485, 0.0
      %v1545 = vadd.f32 %v1543, %v1544
      %v1546 = vsel %vm1492, %v1486, 0.0
      %v1547 = vadd.f32 %v1545, %v1546
      %v1548 = vsel %vm1492, %v1487, 0.0
      %v1549 = vadd.f32 %v1547, %v1548
      %v1550 = vsel %vm1492, %v1488, 0.0
      %v1551 = vadd.f32 %v1549, %v1550
      %v1552 = vsel %vm1492, %v1489, 0.0
      %v1553 = vadd.f32 %v1551, %v1552
      %v1554 = vsel %vm1492, %v1490, 0.0
      %v1555 = vadd.f32 %v1553, %v1554
      %v1556 = vrot.slane %v1555, 4
      %v1557 = vadd.f32 %v1555, %v1556
      %v1558 = vrot.slane %v1557, 2
      %v1559 = vadd.f32 %v1557, %v1558
      %v1560 = vrot.slane %v1559, 1
      %v1561 = vadd.f32 %v1559, %v1560
      %v1562 = vadd.f32 %v1491, %v1561
      %vm1563 = vcmask 253952
      %1564 = vst.msk [vmem:[#allocation2] sm:$0x1] %vm1563, %v1562
      // Predicated region
      $region45: #{timm_model_forward.1} parent=39 // pred_check
        %p1565 = pneg %p236
      $region46: #{timm_model_forward.1} parent=39 // pred_check_branch
        %1567 = sbr.rel (%p1565) target = $region48
      $region47: #{timm_model_forward.1} parent=39 // pred_region
        %v1568 = vld [vmem:[#allocation2] sm:$0x1]
        %v1569 = vmul.f32 %v1568, 0.00390625
        %v1570 = vld [vmem:[%s3] sm:$0x1]
        %v1571 = vmul.f32 %v1569, %v1570
        %v1572 = vsel %vm1563, %v1571, 0.0
        %1573 = vadd.xlane.f32.xlu0 %v1572
        %v1574 = vpop.xlane.xlu0 %1573
        %v1575 = vld [vmem:[#allocation3] sm:$0x1]
        %v1576 = vadd.f32 %v1574, %v1575
        %vm1577 = vcmask 0
        %1578 = vst.msk [vmem:[%s234] sm:$0x1] %vm1577, %v1576
      $region48: #{timm_model_forward.1} parent=39 // pred_fallthru
        _
      %p1579 = scmp.lt.s32.totalorder %s22, 1
      %s1580 = scalar_select %p1579, %s22, 1
      %s1581 = scalar_lea.vmem %s5, %s1580
      // Predicated region
      $region49: #{timm_model_forward.1} parent=39 // pred_check
        %p1582 = pneg %p158
      $region50: #{timm_model_forward.1} parent=39 // pred_check_branch
        %1584 = sbr.rel (%p1582) target = $region52
      $region51: #{timm_model_forward.1} parent=39 // pred_region
        _
      $region52: #{timm_model_forward.1} parent=39 // pred_fallthru
        _
    $region40: #{timm_model_forward.1} parent=5 // pred_fallthru
      _
    %p1585 = scmp.le.s32.totalorder 2, %s13
    // Predicated region
    $region53: #{timm_model_forward.1} parent=5 // pred_check
      %p1586 = pneg %p1585
    $region54: #{timm_model_forward.1} parent=5 // pred_check_branch
      %1588 = sbr.rel (%p1586) target = $region56
    $region55: #{timm_model_forward.1} parent=5 // pred_region
      %s1589 = ssub.s32 %s13, 2
      // Predicated region
      $region57: #{timm_model_forward.1} parent=55 // pred_check
        %p1590 = pneg %p164
      $region58: #{timm_model_forward.1} parent=55 // pred_check_branch
        %1592 = sbr.rel (%p1590) target = $region60
      $region59: #{timm_model_forward.1} parent=55 // pred_region
        %p1593 = scmp.lt.s32.totalorder %s24, 1
        %s1594 = scalar_select %p1593, %s24, 1
        %s1595 = scalar_lea.vmem %s5, %s1594
      $region60: #{timm_model_forward.1} parent=55 // pred_fallthru
        _
    $region56: #{timm_model_forward.1} parent=5 // pred_fallthru
      _
  $region6: #{timm_model_forward.1} parent=0 // loop_footer
    %s17 = sadd.s32 1, %s13
  $region7: #{timm_model_forward.1} parent=0 // loop_footer_branch
    %12 = sbr.rel target = $region3
  $region8: #{timm_model_forward.1} parent=0 // loop_exit
    _

</llo_original>
